<compile_context>
chip_gen: v7x
topology: tpu7x:2x2x1
jax: 0.10.0
libtpu: 0.0.40
codegen_flags: <defaults>
</compile_context>

<pallas_src>
import jax
import jax.numpy as jnp
from jax import lax
from jax.experimental import pallas as pl
from jax.experimental.pallas import tpu as pltpu


def _make_lstm_bgmm_kernel(T, B, H):
    """LSTM recurrence + 'bgmm' likelihood with register-resident h_t."""
    H3 = 3 * H

    def kernel(pre_ref, whh_ref, out_ref):
        # pre_ref: (T, B, 4H)  x @ W_ih + (b_ih + b_hh), gate order (i, f, o, g)
        # whh_ref: (H, 4H)     fused recurrent weights, same gate order
        # out_ref: (B, T, H)   batch-major hidden states after bgmm likelihood
        whh = whh_ref[...]                          # hoisted, loop-invariant

        h = jnp.zeros((B, H), jnp.float32)
        c = jnp.zeros((B, H), jnp.float32)
        hs = []
        for t in range(T):                          # fully unrolled (T static & small)
            pre = pre_ref[t]                        # (B, 4H) — input proj + bias already in
            for k in range(H):                      # H=3 recurrent FMAs on the VPU
                pre = pre + h[:, k:k + 1] * whh[k:k + 1, :]

            # One sigmoid over the lane-contiguous [i|f|o] block, one tanh for g.
            ifo = jax.nn.sigmoid(pre[:, :H3])
            g = jnp.tanh(pre[:, H3:])
            i = ifo[:, 0:H]
            f = ifo[:, H:2 * H]
            o = ifo[:, 2 * H:H3]

            c = f * c + i * g
            h = o * jnp.tanh(c)
            hs.append(h)                            # register-resident (6 f32 each)

        # Batch-major stack; bgmm likelihood on disjoint column slices
        # (no iota/where, no wasted exp on column 0); exactly ONE store.
        z = jnp.stack(hs, axis=1)                   # (B, T, H)
        out_ref[...] = jnp.concatenate(
            [jax.nn.sigmoid(z[..., :1]), jnp.exp(z[..., 1:])], axis=-1)

    return kernel


def fuse_lstm_params(w_ih, w_hh, b_ih, b_hh):
    """One-time parameter preparation (NOT on the per-call path).

    Fuses the 4 per-gate blocks into single (K, 4H) matrices and reorders
    PyTorch's (i, f, g, o) gate layout to (i, f, o, g) so a single sigmoid
    covers i|f|o inside the kernel.
    """
    def fuse(w):                                    # (4H, K) -> (K, 4H)
        i, f, g, o = jnp.split(w, 4, axis=0)
        return jnp.concatenate([i, f, o, g], axis=0).T

    wih = fuse(w_ih).astype(jnp.float32)                     # (C, 4H)
    whh = fuse(w_hh).astype(jnp.float32)                     # (H, 4H)
    b = fuse((b_ih + b_hh)[:, None]).astype(jnp.float32)     # (1, 4H)
    return wih, whh, b


@jax.jit
def lstm_bgmm_forward(x, wih, whh, b):
    """x: (B, T, C) batch-first.  wih/whh/b from fuse_lstm_params.  Returns (B*T, H)."""
    if x.ndim < 3:
        x = x[:, None, :]                           # matches torch.unsqueeze(x, 1)
    B, T, C = x.shape
    H = whh.shape[0]

    # Input projection hoisted out of the recurrence: one matmul over all T*B
    # rows, fused by XLA with the batch-first -> time-major transpose.
    pre = jnp.einsum('btc,cg->tbg', x.astype(jnp.float32), wih,
                     precision=lax.Precision.HIGHEST) + b     # (T, B, 4H)

    vmem = pl.BlockSpec(memory_space=pltpu.MemorySpace.VMEM)
    out = pl.pallas_call(
        _make_lstm_bgmm_kernel(T, B, H),
        out_shape=jax.ShapeDtypeStruct((B, T, H), jnp.float32),
        in_specs=[vmem, vmem],
        out_specs=vmem,
    )(pre, whh)

    return out.reshape(B * T, H)                    # trivial, fused under jit


def _reference_forward(x, w_ih, w_hh, b_ih, b_hh):
    """Pure-JAX reference of the PyTorch module (nn.LSTM + bgmm likelihood)."""
    B, T, C = x.shape
    H = w_hh.shape[1]

    def cell(carry, xt):
        h, c = carry
        gates = (jnp.dot(xt, w_ih.T, precision=lax.Precision.HIGHEST)
                 + jnp.dot(h, w_hh.T, precision=lax.Precision.HIGHEST)
                 + b_ih + b_hh)
        i, f, g, o = jnp.split(gates, 4, axis=-1)
        i, f, o = jax.nn.sigmoid(i), jax.nn.sigmoid(f), jax.nn.sigmoid(o)
        g = jnp.tanh(g)
        c = f * c + i * g
        h = o * jnp.tanh(c)
        return (h, c), h

    xs = jnp.transpose(x, (1, 0, 2))
    (_, _), hs = lax.scan(cell, (jnp.zeros((B, H)), jnp.zeros((B, H))), xs)
    z = jnp.transpose(hs, (1, 0, 2)).reshape(B * T, H)
    return jnp.concatenate([jax.nn.sigmoid(z[:, :1]), jnp.exp(z[:, 1:])], axis=-1)


if __name__ == "__main__":
    # Module config: LSTM(in_channels=4, likelihood_fn='bgmm') -> hidden/out = 3
    in_channels = 4
    hidden = 3          # _define_out_channels('bgmm')
    B, T = 2, 8

    key = jax.random.PRNGKey(0)
    kx, k1, k2, k3, k4 = jax.random.split(key, 5)

    # Deterministic parameter init mimicking nn.LSTM's U(-1/sqrt(H), 1/sqrt(H))
    k = 1.0 / jnp.sqrt(hidden)
    w_ih = jax.random.uniform(k1, (4 * hidden, in_channels), jnp.float32, -k, k)
    w_hh = jax.random.uniform(k2, (4 * hidden, hidden), jnp.float32, -k, k)
    b_ih = jax.random.uniform(k3, (4 * hidden,), jnp.float32, -k, k)
    b_hh = jax.random.uniform(k4, (4 * hidden,), jnp.float32, -k, k)

    x = jax.random.normal(kx, (B, T, in_channels), jnp.float32)

    # Parameter fusion happens once, outside the per-call path.
    wih, whh, b = fuse_lstm_params(w_ih, w_hh, b_ih, b_hh)

    out = lstm_bgmm_forward(x, wih, whh, b)
    out = jax.block_until_ready(out)

    ref = _reference_forward(x, w_ih, w_hh, b_ih, b_hh)
    assert out.shape == (B * T, hidden)
    assert jnp.allclose(out, ref, atol=1e-5, rtol=1e-5), "mismatch vs reference"

    print("KERNEL_OK")
</pallas_src>

<mosaic_0001>
module attributes {stable_mosaic.version = 11 : i64} {
  func.func @kernel(%arg0: memref<8x2x12xf32, #tpu.memory_space<vmem>>, %arg1: memref<3x12xf32, #tpu.memory_space<vmem>>, %arg2: memref<2x8x3xf32, #tpu.memory_space<vmem>>) attributes {dimension_semantics = [], scalar_prefetch = 0 : i64, scratch_operands = 0 : i64, tpu.core_type = #tpu.core_type<tc>} {
    %c0 = arith.constant 0 : index
    %c0_0 = arith.constant 0 : index
    %0 = vector.load %arg1[%c0, %c0_0] : memref<3x12xf32, #tpu.memory_space<vmem>>, vector<3x12xf32>
    %cst = arith.constant 0.000000e+00 : f32
    %1 = vector.broadcast %cst : f32 to vector<2x3xf32>
    %cst_1 = arith.constant 0.000000e+00 : f32
    %2 = vector.broadcast %cst_1 : f32 to vector<2x3xf32>
    %c0_2 = arith.constant 0 : index
    %c0_3 = arith.constant 0 : index
    %c0_4 = arith.constant 0 : index
    %3 = vector.load %arg0[%c0_2, %c0_3, %c0_4] : memref<8x2x12xf32, #tpu.memory_space<vmem>>, vector<1x2x12xf32>
    %4 = vector.shape_cast %3 : vector<1x2x12xf32> to vector<2x12xf32>
    %5 = vector.extract_strided_slice %1 {offsets = [0, 0], sizes = [2, 1], strides = [1, 1]} : vector<2x3xf32> to vector<2x1xf32>
    %6 = vector.extract_strided_slice %0 {offsets = [0, 0], sizes = [1, 12], strides = [1, 1]} : vector<3x12xf32> to vector<1x12xf32>
    %7 = vector.broadcast %5 : vector<2x1xf32> to vector<2x12xf32>
    %8 = vector.broadcast %6 : vector<1x12xf32> to vector<2x12xf32>
    %9 = arith.mulf %7, %8 : vector<2x12xf32>
    %10 = arith.addf %4, %9 : vector<2x12xf32>
    %11 = vector.extract_strided_slice %1 {offsets = [0, 1], sizes = [2, 1], strides = [1, 1]} : vector<2x3xf32> to vector<2x1xf32>
    %12 = vector.extract_strided_slice %0 {offsets = [1, 0], sizes = [1, 12], strides = [1, 1]} : vector<3x12xf32> to vector<1x12xf32>
    %13 = vector.broadcast %11 : vector<2x1xf32> to vector<2x12xf32>
    %14 = vector.broadcast %12 : vector<1x12xf32> to vector<2x12xf32>
    %15 = arith.mulf %13, %14 : vector<2x12xf32>
    %16 = arith.addf %10, %15 : vector<2x12xf32>
    %17 = vector.extract_strided_slice %1 {offsets = [0, 2], sizes = [2, 1], strides = [1, 1]} : vector<2x3xf32> to vector<2x1xf32>
    %18 = vector.extract_strided_slice %0 {offsets = [2, 0], sizes = [1, 12], strides = [1, 1]} : vector<3x12xf32> to vector<1x12xf32>
    %19 = vector.broadcast %17 : vector<2x1xf32> to vector<2x12xf32>
    %20 = vector.broadcast %18 : vector<1x12xf32> to vector<2x12xf32>
    %21 = arith.mulf %19, %20 : vector<2x12xf32>
    %22 = arith.addf %16, %21 : vector<2x12xf32>
    %23 = vector.extract_strided_slice %22 {offsets = [0, 0], sizes = [2, 9], strides = [1, 1]} : vector<2x12xf32> to vector<2x9xf32>
    %24 = arith.negf %23 : vector<2x9xf32>
    %25 = math.exp %24 : vector<2x9xf32>
    %cst_5 = arith.constant 1.000000e+00 : f32
    %26 = vector.broadcast %cst_5 : f32 to vector<2x9xf32>
    %27 = arith.addf %26, %25 : vector<2x9xf32>
    %28 = arith.divf %26, %27 : vector<2x9xf32>
    %29 = vector.extract_strided_slice %22 {offsets = [0, 9], sizes = [2, 3], strides = [1, 1]} : vector<2x12xf32> to vector<2x3xf32>
    %30 = math.tanh %29 : vector<2x3xf32>
    %31 = vector.extract_strided_slice %28 {offsets = [0, 0], sizes = [2, 3], strides = [1, 1]} : vector<2x9xf32> to vector<2x3xf32>
    %32 = vector.extract_strided_slice %28 {offsets = [0, 3], sizes = [2, 3], strides = [1, 1]} : vector<2x9xf32> to vector<2x3xf32>
    %33 = vector.extract_strided_slice %28 {offsets = [0, 6], sizes = [2, 3], strides = [1, 1]} : vector<2x9xf32> to vector<2x3xf32>
    %34 = arith.mulf %32, %2 : vector<2x3xf32>
    %35 = arith.mulf %31, %30 : vector<2x3xf32>
    %36 = arith.addf %34, %35 : vector<2x3xf32>
    %37 = math.tanh %36 : vector<2x3xf32>
    %38 = arith.mulf %33, %37 : vector<2x3xf32>
    %c1 = arith.constant 1 : index
    %c0_6 = arith.constant 0 : index
    %c0_7 = arith.constant 0 : index
    %39 = vector.load %arg0[%c1, %c0_6, %c0_7] : memref<8x2x12xf32, #tpu.memory_space<vmem>>, vector<1x2x12xf32>
    %40 = vector.shape_cast %39 : vector<1x2x12xf32> to vector<2x12xf32>
    %41 = vector.extract_strided_slice %38 {offsets = [0, 0], sizes = [2, 1], strides = [1, 1]} : vector<2x3xf32> to vector<2x1xf32>
    %42 = vector.extract_strided_slice %0 {offsets = [0, 0], sizes = [1, 12], strides = [1, 1]} : vector<3x12xf32> to vector<1x12xf32>
    %43 = vector.broadcast %41 : vector<2x1xf32> to vector<2x12xf32>
    %44 = vector.broadcast %42 : vector<1x12xf32> to vector<2x12xf32>
    %45 = arith.mulf %43, %44 : vector<2x12xf32>
    %46 = arith.addf %40, %45 : vector<2x12xf32>
    %47 = vector.extract_strided_slice %38 {offsets = [0, 1], sizes = [2, 1], strides = [1, 1]} : vector<2x3xf32> to vector<2x1xf32>
    %48 = vector.extract_strided_slice %0 {offsets = [1, 0], sizes = [1, 12], strides = [1, 1]} : vector<3x12xf32> to vector<1x12xf32>
    %49 = vector.broadcast %47 : vector<2x1xf32> to vector<2x12xf32>
    %50 = vector.broadcast %48 : vector<1x12xf32> to vector<2x12xf32>
    %51 = arith.mulf %49, %50 : vector<2x12xf32>
    %52 = arith.addf %46, %51 : vector<2x12xf32>
    %53 = vector.extract_strided_slice %38 {offsets = [0, 2], sizes = [2, 1], strides = [1, 1]} : vector<2x3xf32> to vector<2x1xf32>
    %54 = vector.extract_strided_slice %0 {offsets = [2, 0], sizes = [1, 12], strides = [1, 1]} : vector<3x12xf32> to vector<1x12xf32>
    %55 = vector.broadcast %53 : vector<2x1xf32> to vector<2x12xf32>
    %56 = vector.broadcast %54 : vector<1x12xf32> to vector<2x12xf32>
    %57 = arith.mulf %55, %56 : vector<2x12xf32>
    %58 = arith.addf %52, %57 : vector<2x12xf32>
    %59 = vector.extract_strided_slice %58 {offsets = [0, 0], sizes = [2, 9], strides = [1, 1]} : vector<2x12xf32> to vector<2x9xf32>
    %60 = arith.negf %59 : vector<2x9xf32>
    %61 = math.exp %60 : vector<2x9xf32>
    %cst_8 = arith.constant 1.000000e+00 : f32
    %62 = vector.broadcast %cst_8 : f32 to vector<2x9xf32>
    %63 = arith.addf %62, %61 : vector<2x9xf32>
    %64 = arith.divf %62, %63 : vector<2x9xf32>
    %65 = vector.extract_strided_slice %58 {offsets = [0, 9], sizes = [2, 3], strides = [1, 1]} : vector<2x12xf32> to vector<2x3xf32>
    %66 = math.tanh %65 : vector<2x3xf32>
    %67 = vector.extract_strided_slice %64 {offsets = [0, 0], sizes = [2, 3], strides = [1, 1]} : vector<2x9xf32> to vector<2x3xf32>
    %68 = vector.extract_strided_slice %64 {offsets = [0, 3], sizes = [2, 3], strides = [1, 1]} : vector<2x9xf32> to vector<2x3xf32>
    %69 = vector.extract_strided_slice %64 {offsets = [0, 6], sizes = [2, 3], strides = [1, 1]} : vector<2x9xf32> to vector<2x3xf32>
    %70 = arith.mulf %68, %36 : vector<2x3xf32>
    %71 = arith.mulf %67, %66 : vector<2x3xf32>
    %72 = arith.addf %70, %71 : vector<2x3xf32>
    %73 = math.tanh %72 : vector<2x3xf32>
    %74 = arith.mulf %69, %73 : vector<2x3xf32>
    %c2 = arith.constant 2 : index
    %c0_9 = arith.constant 0 : index
    %c0_10 = arith.constant 0 : index
    %75 = vector.load %arg0[%c2, %c0_9, %c0_10] : memref<8x2x12xf32, #tpu.memory_space<vmem>>, vector<1x2x12xf32>
    %76 = vector.shape_cast %75 : vector<1x2x12xf32> to vector<2x12xf32>
    %77 = vector.extract_strided_slice %74 {offsets = [0, 0], sizes = [2, 1], strides = [1, 1]} : vector<2x3xf32> to vector<2x1xf32>
    %78 = vector.extract_strided_slice %0 {offsets = [0, 0], sizes = [1, 12], strides = [1, 1]} : vector<3x12xf32> to vector<1x12xf32>
    %79 = vector.broadcast %77 : vector<2x1xf32> to vector<2x12xf32>
    %80 = vector.broadcast %78 : vector<1x12xf32> to vector<2x12xf32>
    %81 = arith.mulf %79, %80 : vector<2x12xf32>
    %82 = arith.addf %76, %81 : vector<2x12xf32>
    %83 = vector.extract_strided_slice %74 {offsets = [0, 1], sizes = [2, 1], strides = [1, 1]} : vector<2x3xf32> to vector<2x1xf32>
    %84 = vector.extract_strided_slice %0 {offsets = [1, 0], sizes = [1, 12], strides = [1, 1]} : vector<3x12xf32> to vector<1x12xf32>
    %85 = vector.broadcast %83 : vector<2x1xf32> to vector<2x12xf32>
    %86 = vector.broadcast %84 : vector<1x12xf32> to vector<2x12xf32>
    %87 = arith.mulf %85, %86 : vector<2x12xf32>
    %88 = arith.addf %82, %87 : vector<2x12xf32>
    %89 = vector.extract_strided_slice %74 {offsets = [0, 2], sizes = [2, 1], strides = [1, 1]} : vector<2x3xf32> to vector<2x1xf32>
    %90 = vector.extract_strided_slice %0 {offsets = [2, 0], sizes = [1, 12], strides = [1, 1]} : vector<3x12xf32> to vector<1x12xf32>
    %91 = vector.broadcast %89 : vector<2x1xf32> to vector<2x12xf32>
    %92 = vector.broadcast %90 : vector<1x12xf32> to vector<2x12xf32>
    %93 = arith.mulf %91, %92 : vector<2x12xf32>
    %94 = arith.addf %88, %93 : vector<2x12xf32>
    %95 = vector.extract_strided_slice %94 {offsets = [0, 0], sizes = [2, 9], strides = [1, 1]} : vector<2x12xf32> to vector<2x9xf32>
    %96 = arith.negf %95 : vector<2x9xf32>
    %97 = math.exp %96 : vector<2x9xf32>
    %cst_11 = arith.constant 1.000000e+00 : f32
    %98 = vector.broadcast %cst_11 : f32 to vector<2x9xf32>
    %99 = arith.addf %98, %97 : vector<2x9xf32>
    %100 = arith.divf %98, %99 : vector<2x9xf32>
    %101 = vector.extract_strided_slice %94 {offsets = [0, 9], sizes = [2, 3], strides = [1, 1]} : vector<2x12xf32> to vector<2x3xf32>
    %102 = math.tanh %101 : vector<2x3xf32>
    %103 = vector.extract_strided_slice %100 {offsets = [0, 0], sizes = [2, 3], strides = [1, 1]} : vector<2x9xf32> to vector<2x3xf32>
    %104 = vector.extract_strided_slice %100 {offsets = [0, 3], sizes = [2, 3], strides = [1, 1]} : vector<2x9xf32> to vector<2x3xf32>
    %105 = vector.extract_strided_slice %100 {offsets = [0, 6], sizes = [2, 3], strides = [1, 1]} : vector<2x9xf32> to vector<2x3xf32>
    %106 = arith.mulf %104, %72 : vector<2x3xf32>
    %107 = arith.mulf %103, %102 : vector<2x3xf32>
    %108 = arith.addf %106, %107 : vector<2x3xf32>
    %109 = math.tanh %108 : vector<2x3xf32>
    %110 = arith.mulf %105, %109 : vector<2x3xf32>
    %c3 = arith.constant 3 : index
    %c0_12 = arith.constant 0 : index
    %c0_13 = arith.constant 0 : index
    %111 = vector.load %arg0[%c3, %c0_12, %c0_13] : memref<8x2x12xf32, #tpu.memory_space<vmem>>, vector<1x2x12xf32>
    %112 = vector.shape_cast %111 : vector<1x2x12xf32> to vector<2x12xf32>
    %113 = vector.extract_strided_slice %110 {offsets = [0, 0], sizes = [2, 1], strides = [1, 1]} : vector<2x3xf32> to vector<2x1xf32>
    %114 = vector.extract_strided_slice %0 {offsets = [0, 0], sizes = [1, 12], strides = [1, 1]} : vector<3x12xf32> to vector<1x12xf32>
    %115 = vector.broadcast %113 : vector<2x1xf32> to vector<2x12xf32>
    %116 = vector.broadcast %114 : vector<1x12xf32> to vector<2x12xf32>
    %117 = arith.mulf %115, %116 : vector<2x12xf32>
    %118 = arith.addf %112, %117 : vector<2x12xf32>
    %119 = vector.extract_strided_slice %110 {offsets = [0, 1], sizes = [2, 1], strides = [1, 1]} : vector<2x3xf32> to vector<2x1xf32>
    %120 = vector.extract_strided_slice %0 {offsets = [1, 0], sizes = [1, 12], strides = [1, 1]} : vector<3x12xf32> to vector<1x12xf32>
    %121 = vector.broadcast %119 : vector<2x1xf32> to vector<2x12xf32>
    %122 = vector.broadcast %120 : vector<1x12xf32> to vector<2x12xf32>
    %123 = arith.mulf %121, %122 : vector<2x12xf32>
    %124 = arith.addf %118, %123 : vector<2x12xf32>
    %125 = vector.extract_strided_slice %110 {offsets = [0, 2], sizes = [2, 1], strides = [1, 1]} : vector<2x3xf32> to vector<2x1xf32>
    %126 = vector.extract_strided_slice %0 {offsets = [2, 0], sizes = [1, 12], strides = [1, 1]} : vector<3x12xf32> to vector<1x12xf32>
    %127 = vector.broadcast %125 : vector<2x1xf32> to vector<2x12xf32>
    %128 = vector.broadcast %126 : vector<1x12xf32> to vector<2x12xf32>
    %129 = arith.mulf %127, %128 : vector<2x12xf32>
    %130 = arith.addf %124, %129 : vector<2x12xf32>
    %131 = vector.extract_strided_slice %130 {offsets = [0, 0], sizes = [2, 9], strides = [1, 1]} : vector<2x12xf32> to vector<2x9xf32>
    %132 = arith.negf %131 : vector<2x9xf32>
    %133 = math.exp %132 : vector<2x9xf32>
    %cst_14 = arith.constant 1.000000e+00 : f32
    %134 = vector.broadcast %cst_14 : f32 to vector<2x9xf32>
    %135 = arith.addf %134, %133 : vector<2x9xf32>
    %136 = arith.divf %134, %135 : vector<2x9xf32>
    %137 = vector.extract_strided_slice %130 {offsets = [0, 9], sizes = [2, 3], strides = [1, 1]} : vector<2x12xf32> to vector<2x3xf32>
    %138 = math.tanh %137 : vector<2x3xf32>
    %139 = vector.extract_strided_slice %136 {offsets = [0, 0], sizes = [2, 3], strides = [1, 1]} : vector<2x9xf32> to vector<2x3xf32>
    %140 = vector.extract_strided_slice %136 {offsets = [0, 3], sizes = [2, 3], strides = [1, 1]} : vector<2x9xf32> to vector<2x3xf32>
    %141 = vector.extract_strided_slice %136 {offsets = [0, 6], sizes = [2, 3], strides = [1, 1]} : vector<2x9xf32> to vector<2x3xf32>
    %142 = arith.mulf %140, %108 : vector<2x3xf32>
    %143 = arith.mulf %139, %138 : vector<2x3xf32>
    %144 = arith.addf %142, %143 : vector<2x3xf32>
    %145 = math.tanh %144 : vector<2x3xf32>
    %146 = arith.mulf %141, %145 : vector<2x3xf32>
    %c4 = arith.constant 4 : index
    %c0_15 = arith.constant 0 : index
    %c0_16 = arith.constant 0 : index
    %147 = vector.load %arg0[%c4, %c0_15, %c0_16] : memref<8x2x12xf32, #tpu.memory_space<vmem>>, vector<1x2x12xf32>
    %148 = vector.shape_cast %147 : vector<1x2x12xf32> to vector<2x12xf32>
    %149 = vector.extract_strided_slice %146 {offsets = [0, 0], sizes = [2, 1], strides = [1, 1]} : vector<2x3xf32> to vector<2x1xf32>
    %150 = vector.extract_strided_slice %0 {offsets = [0, 0], sizes = [1, 12], strides = [1, 1]} : vector<3x12xf32> to vector<1x12xf32>
    %151 = vector.broadcast %149 : vector<2x1xf32> to vector<2x12xf32>
    %152 = vector.broadcast %150 : vector<1x12xf32> to vector<2x12xf32>
    %153 = arith.mulf %151, %152 : vector<2x12xf32>
    %154 = arith.addf %148, %153 : vector<2x12xf32>
    %155 = vector.extract_strided_slice %146 {offsets = [0, 1], sizes = [2, 1], strides = [1, 1]} : vector<2x3xf32> to vector<2x1xf32>
    %156 = vector.extract_strided_slice %0 {offsets = [1, 0], sizes = [1, 12], strides = [1, 1]} : vector<3x12xf32> to vector<1x12xf32>
    %157 = vector.broadcast %155 : vector<2x1xf32> to vector<2x12xf32>
    %158 = vector.broadcast %156 : vector<1x12xf32> to vector<2x12xf32>
    %159 = arith.mulf %157, %158 : vector<2x12xf32>
    %160 = arith.addf %154, %159 : vector<2x12xf32>
    %161 = vector.extract_strided_slice %146 {offsets = [0, 2], sizes = [2, 1], strides = [1, 1]} : vector<2x3xf32> to vector<2x1xf32>
    %162 = vector.extract_strided_slice %0 {offsets = [2, 0], sizes = [1, 12], strides = [1, 1]} : vector<3x12xf32> to vector<1x12xf32>
    %163 = vector.broadcast %161 : vector<2x1xf32> to vector<2x12xf32>
    %164 = vector.broadcast %162 : vector<1x12xf32> to vector<2x12xf32>
    %165 = arith.mulf %163, %164 : vector<2x12xf32>
    %166 = arith.addf %160, %165 : vector<2x12xf32>
    %167 = vector.extract_strided_slice %166 {offsets = [0, 0], sizes = [2, 9], strides = [1, 1]} : vector<2x12xf32> to vector<2x9xf32>
    %168 = arith.negf %167 : vector<2x9xf32>
    %169 = math.exp %168 : vector<2x9xf32>
    %cst_17 = arith.constant 1.000000e+00 : f32
    %170 = vector.broadcast %cst_17 : f32 to vector<2x9xf32>
    %171 = arith.addf %170, %169 : vector<2x9xf32>
    %172 = arith.divf %170, %171 : vector<2x9xf32>
    %173 = vector.extract_strided_slice %166 {offsets = [0, 9], sizes = [2, 3], strides = [1, 1]} : vector<2x12xf32> to vector<2x3xf32>
    %174 = math.tanh %173 : vector<2x3xf32>
    %175 = vector.extract_strided_slice %172 {offsets = [0, 0], sizes = [2, 3], strides = [1, 1]} : vector<2x9xf32> to vector<2x3xf32>
    %176 = vector.extract_strided_slice %172 {offsets = [0, 3], sizes = [2, 3], strides = [1, 1]} : vector<2x9xf32> to vector<2x3xf32>
    %177 = vector.extract_strided_slice %172 {offsets = [0, 6], sizes = [2, 3], strides = [1, 1]} : vector<2x9xf32> to vector<2x3xf32>
    %178 = arith.mulf %176, %144 : vector<2x3xf32>
    %179 = arith.mulf %175, %174 : vector<2x3xf32>
    %180 = arith.addf %178, %179 : vector<2x3xf32>
    %181 = math.tanh %180 : vector<2x3xf32>
    %182 = arith.mulf %177, %181 : vector<2x3xf32>
    %c5 = arith.constant 5 : index
    %c0_18 = arith.constant 0 : index
    %c0_19 = arith.constant 0 : index
    %183 = vector.load %arg0[%c5, %c0_18, %c0_19] : memref<8x2x12xf32, #tpu.memory_space<vmem>>, vector<1x2x12xf32>
    %184 = vector.shape_cast %183 : vector<1x2x12xf32> to vector<2x12xf32>
    %185 = vector.extract_strided_slice %182 {offsets = [0, 0], sizes = [2, 1], strides = [1, 1]} : vector<2x3xf32> to vector<2x1xf32>
    %186 = vector.extract_strided_slice %0 {offsets = [0, 0], sizes = [1, 12], strides = [1, 1]} : vector<3x12xf32> to vector<1x12xf32>
    %187 = vector.broadcast %185 : vector<2x1xf32> to vector<2x12xf32>
    %188 = vector.broadcast %186 : vector<1x12xf32> to vector<2x12xf32>
    %189 = arith.mulf %187, %188 : vector<2x12xf32>
    %190 = arith.addf %184, %189 : vector<2x12xf32>
    %191 = vector.extract_strided_slice %182 {offsets = [0, 1], sizes = [2, 1], strides = [1, 1]} : vector<2x3xf32> to vector<2x1xf32>
    %192 = vector.extract_strided_slice %0 {offsets = [1, 0], sizes = [1, 12], strides = [1, 1]} : vector<3x12xf32> to vector<1x12xf32>
    %193 = vector.broadcast %191 : vector<2x1xf32> to vector<2x12xf32>
    %194 = vector.broadcast %192 : vector<1x12xf32> to vector<2x12xf32>
    %195 = arith.mulf %193, %194 : vector<2x12xf32>
    %196 = arith.addf %190, %195 : vector<2x12xf32>
    %197 = vector.extract_strided_slice %182 {offsets = [0, 2], sizes = [2, 1], strides = [1, 1]} : vector<2x3xf32> to vector<2x1xf32>
    %198 = vector.extract_strided_slice %0 {offsets = [2, 0], sizes = [1, 12], strides = [1, 1]} : vector<3x12xf32> to vector<1x12xf32>
    %199 = vector.broadcast %197 : vector<2x1xf32> to vector<2x12xf32>
    %200 = vector.broadcast %198 : vector<1x12xf32> to vector<2x12xf32>
    %201 = arith.mulf %199, %200 : vector<2x12xf32>
    %202 = arith.addf %196, %201 : vector<2x12xf32>
    %203 = vector.extract_strided_slice %202 {offsets = [0, 0], sizes = [2, 9], strides = [1, 1]} : vector<2x12xf32> to vector<2x9xf32>
    %204 = arith.negf %203 : vector<2x9xf32>
    %205 = math.exp %204 : vector<2x9xf32>
    %cst_20 = arith.constant 1.000000e+00 : f32
    %206 = vector.broadcast %cst_20 : f32 to vector<2x9xf32>
    %207 = arith.addf %206, %205 : vector<2x9xf32>
    %208 = arith.divf %206, %207 : vector<2x9xf32>
    %209 = vector.extract_strided_slice %202 {offsets = [0, 9], sizes = [2, 3], strides = [1, 1]} : vector<2x12xf32> to vector<2x3xf32>
    %210 = math.tanh %209 : vector<2x3xf32>
    %211 = vector.extract_strided_slice %208 {offsets = [0, 0], sizes = [2, 3], strides = [1, 1]} : vector<2x9xf32> to vector<2x3xf32>
    %212 = vector.extract_strided_slice %208 {offsets = [0, 3], sizes = [2, 3], strides = [1, 1]} : vector<2x9xf32> to vector<2x3xf32>
    %213 = vector.extract_strided_slice %208 {offsets = [0, 6], sizes = [2, 3], strides = [1, 1]} : vector<2x9xf32> to vector<2x3xf32>
    %214 = arith.mulf %212, %180 : vector<2x3xf32>
    %215 = arith.mulf %211, %210 : vector<2x3xf32>
    %216 = arith.addf %214, %215 : vector<2x3xf32>
    %217 = math.tanh %216 : vector<2x3xf32>
    %218 = arith.mulf %213, %217 : vector<2x3xf32>
    %c6 = arith.constant 6 : index
    %c0_21 = arith.constant 0 : index
    %c0_22 = arith.constant 0 : index
    %219 = vector.load %arg0[%c6, %c0_21, %c0_22] : memref<8x2x12xf32, #tpu.memory_space<vmem>>, vector<1x2x12xf32>
    %220 = vector.shape_cast %219 : vector<1x2x12xf32> to vector<2x12xf32>
    %221 = vector.extract_strided_slice %218 {offsets = [0, 0], sizes = [2, 1], strides = [1, 1]} : vector<2x3xf32> to vector<2x1xf32>
    %222 = vector.extract_strided_slice %0 {offsets = [0, 0], sizes = [1, 12], strides = [1, 1]} : vector<3x12xf32> to vector<1x12xf32>
    %223 = vector.broadcast %221 : vector<2x1xf32> to vector<2x12xf32>
    %224 = vector.broadcast %222 : vector<1x12xf32> to vector<2x12xf32>
    %225 = arith.mulf %223, %224 : vector<2x12xf32>
    %226 = arith.addf %220, %225 : vector<2x12xf32>
    %227 = vector.extract_strided_slice %218 {offsets = [0, 1], sizes = [2, 1], strides = [1, 1]} : vector<2x3xf32> to vector<2x1xf32>
    %228 = vector.extract_strided_slice %0 {offsets = [1, 0], sizes = [1, 12], strides = [1, 1]} : vector<3x12xf32> to vector<1x12xf32>
    %229 = vector.broadcast %227 : vector<2x1xf32> to vector<2x12xf32>
    %230 = vector.broadcast %228 : vector<1x12xf32> to vector<2x12xf32>
    %231 = arith.mulf %229, %230 : vector<2x12xf32>
    %232 = arith.addf %226, %231 : vector<2x12xf32>
    %233 = vector.extract_strided_slice %218 {offsets = [0, 2], sizes = [2, 1], strides = [1, 1]} : vector<2x3xf32> to vector<2x1xf32>
    %234 = vector.extract_strided_slice %0 {offsets = [2, 0], sizes = [1, 12], strides = [1, 1]} : vector<3x12xf32> to vector<1x12xf32>
    %235 = vector.broadcast %233 : vector<2x1xf32> to vector<2x12xf32>
    %236 = vector.broadcast %234 : vector<1x12xf32> to vector<2x12xf32>
    %237 = arith.mulf %235, %236 : vector<2x12xf32>
    %238 = arith.addf %232, %237 : vector<2x12xf32>
    %239 = vector.extract_strided_slice %238 {offsets = [0, 0], sizes = [2, 9], strides = [1, 1]} : vector<2x12xf32> to vector<2x9xf32>
    %240 = arith.negf %239 : vector<2x9xf32>
    %241 = math.exp %240 : vector<2x9xf32>
    %cst_23 = arith.constant 1.000000e+00 : f32
    %242 = vector.broadcast %cst_23 : f32 to vector<2x9xf32>
    %243 = arith.addf %242, %241 : vector<2x9xf32>
    %244 = arith.divf %242, %243 : vector<2x9xf32>
    %245 = vector.extract_strided_slice %238 {offsets = [0, 9], sizes = [2, 3], strides = [1, 1]} : vector<2x12xf32> to vector<2x3xf32>
    %246 = math.tanh %245 : vector<2x3xf32>
    %247 = vector.extract_strided_slice %244 {offsets = [0, 0], sizes = [2, 3], strides = [1, 1]} : vector<2x9xf32> to vector<2x3xf32>
    %248 = vector.extract_strided_slice %244 {offsets = [0, 3], sizes = [2, 3], strides = [1, 1]} : vector<2x9xf32> to vector<2x3xf32>
    %249 = vector.extract_strided_slice %244 {offsets = [0, 6], sizes = [2, 3], strides = [1, 1]} : vector<2x9xf32> to vector<2x3xf32>
    %250 = arith.mulf %248, %216 : vector<2x3xf32>
    %251 = arith.mulf %247, %246 : vector<2x3xf32>
    %252 = arith.addf %250, %251 : vector<2x3xf32>
    %253 = math.tanh %252 : vector<2x3xf32>
    %254 = arith.mulf %249, %253 : vector<2x3xf32>
    %c7 = arith.constant 7 : index
    %c0_24 = arith.constant 0 : index
    %c0_25 = arith.constant 0 : index
    %255 = vector.load %arg0[%c7, %c0_24, %c0_25] : memref<8x2x12xf32, #tpu.memory_space<vmem>>, vector<1x2x12xf32>
    %256 = vector.shape_cast %255 : vector<1x2x12xf32> to vector<2x12xf32>
    %257 = vector.extract_strided_slice %254 {offsets = [0, 0], sizes = [2, 1], strides = [1, 1]} : vector<2x3xf32> to vector<2x1xf32>
    %258 = vector.extract_strided_slice %0 {offsets = [0, 0], sizes = [1, 12], strides = [1, 1]} : vector<3x12xf32> to vector<1x12xf32>
    %259 = vector.broadcast %257 : vector<2x1xf32> to vector<2x12xf32>
    %260 = vector.broadcast %258 : vector<1x12xf32> to vector<2x12xf32>
    %261 = arith.mulf %259, %260 : vector<2x12xf32>
    %262 = arith.addf %256, %261 : vector<2x12xf32>
    %263 = vector.extract_strided_slice %254 {offsets = [0, 1], sizes = [2, 1], strides = [1, 1]} : vector<2x3xf32> to vector<2x1xf32>
    %264 = vector.extract_strided_slice %0 {offsets = [1, 0], sizes = [1, 12], strides = [1, 1]} : vector<3x12xf32> to vector<1x12xf32>
    %265 = vector.broadcast %263 : vector<2x1xf32> to vector<2x12xf32>
    %266 = vector.broadcast %264 : vector<1x12xf32> to vector<2x12xf32>
    %267 = arith.mulf %265, %266 : vector<2x12xf32>
    %268 = arith.addf %262, %267 : vector<2x12xf32>
    %269 = vector.extract_strided_slice %254 {offsets = [0, 2], sizes = [2, 1], strides = [1, 1]} : vector<2x3xf32> to vector<2x1xf32>
    %270 = vector.extract_strided_slice %0 {offsets = [2, 0], sizes = [1, 12], strides = [1, 1]} : vector<3x12xf32> to vector<1x12xf32>
    %271 = vector.broadcast %269 : vector<2x1xf32> to vector<2x12xf32>
    %272 = vector.broadcast %270 : vector<1x12xf32> to vector<2x12xf32>
    %273 = arith.mulf %271, %272 : vector<2x12xf32>
    %274 = arith.addf %268, %273 : vector<2x12xf32>
    %275 = vector.extract_strided_slice %274 {offsets = [0, 0], sizes = [2, 9], strides = [1, 1]} : vector<2x12xf32> to vector<2x9xf32>
    %276 = arith.negf %275 : vector<2x9xf32>
    %277 = math.exp %276 : vector<2x9xf32>
    %cst_26 = arith.constant 1.000000e+00 : f32
    %278 = vector.broadcast %cst_26 : f32 to vector<2x9xf32>
    %279 = arith.addf %278, %277 : vector<2x9xf32>
    %280 = arith.divf %278, %279 : vector<2x9xf32>
    %281 = vector.extract_strided_slice %274 {offsets = [0, 9], sizes = [2, 3], strides = [1, 1]} : vector<2x12xf32> to vector<2x3xf32>
    %282 = math.tanh %281 : vector<2x3xf32>
    %283 = vector.extract_strided_slice %280 {offsets = [0, 0], sizes = [2, 3], strides = [1, 1]} : vector<2x9xf32> to vector<2x3xf32>
    %284 = vector.extract_strided_slice %280 {offsets = [0, 3], sizes = [2, 3], strides = [1, 1]} : vector<2x9xf32> to vector<2x3xf32>
    %285 = vector.extract_strided_slice %280 {offsets = [0, 6], sizes = [2, 3], strides = [1, 1]} : vector<2x9xf32> to vector<2x3xf32>
    %286 = arith.mulf %284, %252 : vector<2x3xf32>
    %287 = arith.mulf %283, %282 : vector<2x3xf32>
    %288 = arith.addf %286, %287 : vector<2x3xf32>
    %289 = math.tanh %288 : vector<2x3xf32>
    %290 = arith.mulf %285, %289 : vector<2x3xf32>
    %291 = vector.shape_cast %38 : vector<2x3xf32> to vector<2x1x3xf32>
    %292 = vector.shape_cast %74 : vector<2x3xf32> to vector<2x1x3xf32>
    %293 = vector.shape_cast %110 : vector<2x3xf32> to vector<2x1x3xf32>
    %294 = vector.shape_cast %146 : vector<2x3xf32> to vector<2x1x3xf32>
    %295 = vector.shape_cast %182 : vector<2x3xf32> to vector<2x1x3xf32>
    %296 = vector.shape_cast %218 : vector<2x3xf32> to vector<2x1x3xf32>
    %297 = vector.shape_cast %254 : vector<2x3xf32> to vector<2x1x3xf32>
    %298 = vector.shape_cast %290 : vector<2x3xf32> to vector<2x1x3xf32>
    %299 = tpu.concatenate %291, %292, %293, %294, %295, %296, %297, %298 in 1 : vector<2x1x3xf32>, vector<2x1x3xf32>, vector<2x1x3xf32>, vector<2x1x3xf32>, vector<2x1x3xf32>, vector<2x1x3xf32>, vector<2x1x3xf32>, vector<2x1x3xf32> -> vector<2x8x3xf32>
    %300 = vector.extract_strided_slice %299 {offsets = [0, 0, 0], sizes = [2, 8, 1], strides = [1, 1, 1]} : vector<2x8x3xf32> to vector<2x8x1xf32>
    %301 = arith.negf %300 : vector<2x8x1xf32>
    %302 = math.exp %301 : vector<2x8x1xf32>
    %cst_27 = arith.constant 1.000000e+00 : f32
    %303 = vector.broadcast %cst_27 : f32 to vector<2x8x1xf32>
    %304 = arith.addf %303, %302 : vector<2x8x1xf32>
    %305 = arith.divf %303, %304 : vector<2x8x1xf32>
    %306 = vector.extract_strided_slice %299 {offsets = [0, 0, 1], sizes = [2, 8, 2], strides = [1, 1, 1]} : vector<2x8x3xf32> to vector<2x8x2xf32>
    %307 = math.exp %306 : vector<2x8x2xf32>
    %308 = tpu.concatenate %305, %307 in 2 : vector<2x8x1xf32>, vector<2x8x2xf32> -> vector<2x8x3xf32>
    %c0_28 = arith.constant 0 : index
    %c0_29 = arith.constant 0 : index
    %c0_30 = arith.constant 0 : index
    %309 = vector.load %arg2[%c0_28, %c0_29, %c0_30] : memref<2x8x3xf32, #tpu.memory_space<vmem>>, vector<2x8x3xf32>
    tpu.vector_store %arg2[%c0_28, %c0_29, %c0_30], %308 {strides = array<i32>} : memref<2x8x3xf32, #tpu.memory_space<vmem>>, vector<2x8x3xf32>,
    return
  }
}

</mosaic_0001>

<llo_original>
// kernel: lstm_bgmm_forward.1
$region0: #{lstm_bgmm_forward.1}
  #allocation0 [shape = 'u32[]', space=smem, size = 0x4, offset = 0x4, fixed_abs, tag = 'smem constant byte address 0x4 - core index']
  #allocation1 [shape = 'u32[144,128]{1,0:T(1,128)}', space=vmem, size = 0x12000, scoped, tag = 'internal scratch']
  %s0 = inlined_call_operand.vmem [shape: f32[8,2,12], index: 0, kind: input, shape index: {}]
  %s1 = inlined_call_operand.vmem [shape: f32[3,12], index: 1, kind: input, shape index: {}]
  %s2 = inlined_call_operand.vmem [shape: f32[2,8,3], index: 2, kind: output, shape index: {}]
  %s3 = sld [smem:[#allocation0]]
  $region18: #{lstm_bgmm_forward.1} parent=0
    _
  %s5 = ssub.s32 1, %s3
  %s6 = scalar_select 0, %s5, %s3
  // Predicated region
  $region2: #{lstm_bgmm_forward.1} parent=0 // pred_check
    _
  $region3: #{lstm_bgmm_forward.1} parent=0 // pred_check_branch
    %8 = sbr.rel (0) target = $region5
  $region4: #{lstm_bgmm_forward.1} parent=0 // pred_region
    _
  $region5: #{lstm_bgmm_forward.1} parent=0 // pred_fallthru
    _
  // Predicated region
  $region6: #{lstm_bgmm_forward.1} parent=0 // pred_check
    _
  $region7: #{lstm_bgmm_forward.1} parent=0 // pred_check_branch
    %10 = sbr.rel (0) target = $region9
  $region8: #{lstm_bgmm_forward.1} parent=0 // pred_region
    _
  $region9: #{lstm_bgmm_forward.1} parent=0 // pred_fallthru
    _
  %v11 = vld [vmem:[%s1] sm:$0x7]
  %v12 = vld [vmem:[%s0] sm:$0x3]
  %v13 = vlaneseq
  %v14 = vshrl.u32 %v13, 7
  %v15 = vsub.s32 0, %v14
  %v16 = vrot.slane %v11, %v15
  %v17 = vmul.f32 %v16, 0.0
  %v18 = vadd.f32 %v12, %v17
  %v19 = vlaneseq
  %v20 = vshrl.u32 %v19, 7
  %v21 = vsub.s32 1, %v20
  %v22 = vrot.slane %v11, %v21
  %v23 = vmul.f32 %v22, 0.0
  %v24 = vadd.f32 %v18, %v23
  %v25 = vlaneseq
  %v26 = vshrl.u32 %v25, 7
  %v27 = vsub.s32 2, %v26
  %v28 = vrot.slane %v11, %v27
  %v29 = vmul.f32 %v28, 0.0
  %v30 = vadd.f32 %v24, %v29
  %v31 = vxor.u32 %v30, 2147483648
  %v32 = vmul.f32 %v31, 1.442695
  %v33 = vpow.pop %v32
  %v34 = vadd.f32 %v33, 1.0
  %v35 = vrcp.pop %v34
  %v36 = vmul.f32 1.0, %v35
  %v37 = vtanh.pop %v30
  %v38 = vmul.f32 %v36, 0.0
  %40 = vrot.lane.b32.xlu0 %v37, 119
  %v41 = vpop.permute.xlu0 %40
  %v43 = vmul.f32 %v36, %v41
  %45 = vrot.lane.b32.xlu0 %v43, 3
  %v46 = vpop.permute.xlu0 %45
  %v48 = vadd.f32 %v38, %v46
  %v49 = vtanh.pop %v48
  %51 = vrot.lane.b32.xlu0 %v49, 3
  %v52 = vpop.permute.xlu0 %51
  %v54 = vmul.f32 %v36, %v52
  %s55 = scalar_lea.vmem %s0, 2
  %v56 = vld [vmem:[%s55] sm:$0x3]
  %58 = vset.pattern.permute.xlu0 6
  %59 = vperm.xlu0 %58, %v54
  %v60 = vpop.permute.xlu0 %59
  %v62 = vmul.f32 %v60, %v16
  %v63 = vadd.f32 %v56, %v62
  %64 = vset.pattern.permute.xlu0 7
  %65 = vperm.xlu0 %64, %v54
  %v66 = vpop.permute.xlu0 %65
  %v68 = vmul.f32 %v66, %v22
  %v69 = vadd.f32 %v63, %v68
  %70 = vset.pattern.permute.xlu0 8
  %71 = vperm.xlu0 %70, %v54
  %v72 = vpop.permute.xlu0 %71
  %v74 = vmul.f32 %v72, %v28
  %v75 = vadd.f32 %v69, %v74
  %v76 = vxor.u32 %v75, 2147483648
  %v77 = vmul.f32 %v76, 1.442695
  %v78 = vpow.pop %v77
  %v79 = vadd.f32 %v78, 1.0
  %v80 = vrcp.pop %v79
  %v81 = vmul.f32 1.0, %v80
  %v82 = vtanh.pop %v75
  %v83 = vmul.f32 %v81, %v48
  %85 = vrot.lane.b32.xlu0 %v82, 119
  %v86 = vpop.permute.xlu0 %85
  %v88 = vmul.f32 %v81, %v86
  %90 = vrot.lane.b32.xlu0 %v88, 3
  %v91 = vpop.permute.xlu0 %90
  %v93 = vadd.f32 %v83, %v91
  %v94 = vtanh.pop %v93
  %96 = vrot.lane.b32.xlu0 %v94, 3
  %v97 = vpop.permute.xlu0 %96
  %v99 = vmul.f32 %v81, %v97
  %s100 = scalar_lea.vmem %s0, 4
  %v101 = vld [vmem:[%s100] sm:$0x3]
  %103 = vset.pattern.permute.xlu0 6
  %104 = vperm.xlu0 %103, %v99
  %v105 = vpop.permute.xlu0 %104
  %v107 = vmul.f32 %v105, %v16
  %v108 = vadd.f32 %v101, %v107
  %109 = vset.pattern.permute.xlu0 7
  %110 = vperm.xlu0 %109, %v99
  %v111 = vpop.permute.xlu0 %110
  %v113 = vmul.f32 %v111, %v22
  %v114 = vadd.f32 %v108, %v113
  %115 = vset.pattern.permute.xlu0 8
  %116 = vperm.xlu0 %115, %v99
  %v117 = vpop.permute.xlu0 %116
  %v119 = vmul.f32 %v117, %v28
  %v120 = vadd.f32 %v114, %v119
  %v121 = vxor.u32 %v120, 2147483648
  %v122 = vmul.f32 %v121, 1.442695
  %v123 = vpow.pop %v122
  %v124 = vadd.f32 %v123, 1.0
  %v125 = vrcp.pop %v124
  %v126 = vmul.f32 1.0, %v125
  %v127 = vtanh.pop %v120
  %v128 = vmul.f32 %v126, %v93
  %130 = vrot.lane.b32.xlu0 %v127, 119
  %v131 = vpop.permute.xlu0 %130
  %v133 = vmul.f32 %v126, %v131
  %135 = vrot.lane.b32.xlu0 %v133, 3
  %v136 = vpop.permute.xlu0 %135
  %v138 = vadd.f32 %v128, %v136
  %v139 = vtanh.pop %v138
  %141 = vrot.lane.b32.xlu0 %v139, 3
  %v142 = vpop.permute.xlu0 %141
  %v144 = vmul.f32 %v126, %v142
  %s145 = scalar_lea.vmem %s0, 6
  %v146 = vld [vmem:[%s145] sm:$0x3]
  %148 = vset.pattern.permute.xlu0 6
  %149 = vperm.xlu0 %148, %v144
  %v150 = vpop.permute.xlu0 %149
  %v152 = vmul.f32 %v150, %v16
  %v153 = vadd.f32 %v146, %v152
  %154 = vset.pattern.permute.xlu0 7
  %155 = vperm.xlu0 %154, %v144
  %v156 = vpop.permute.xlu0 %155
  %v158 = vmul.f32 %v156, %v22
  %v159 = vadd.f32 %v153, %v158
  %160 = vset.pattern.permute.xlu0 8
  %161 = vperm.xlu0 %160, %v144
  %v162 = vpop.permute.xlu0 %161
  %v164 = vmul.f32 %v162, %v28
  %v165 = vadd.f32 %v159, %v164
  %v166 = vxor.u32 %v165, 2147483648
  %v167 = vmul.f32 %v166, 1.442695
  %v168 = vpow.pop %v167
  %v169 = vadd.f32 %v168, 1.0
  %v170 = vrcp.pop %v169
  %v171 = vmul.f32 1.0, %v170
  %v172 = vtanh.pop %v165
  %v173 = vmul.f32 %v171, %v138
  %175 = vrot.lane.b32.xlu0 %v172, 119
  %v176 = vpop.permute.xlu0 %175
  %v178 = vmul.f32 %v171, %v176
  %180 = vrot.lane.b32.xlu0 %v178, 3
  %v181 = vpop.permute.xlu0 %180
  %v183 = vadd.f32 %v173, %v181
  %v184 = vtanh.pop %v183
  %186 = vrot.lane.b32.xlu0 %v184, 3
  %v187 = vpop.permute.xlu0 %186
  %v189 = vmul.f32 %v171, %v187
  %s190 = scalar_lea.vmem %s0, 8
  %v191 = vld [vmem:[%s190] sm:$0x3]
  %193 = vset.pattern.permute.xlu0 6
  %194 = vperm.xlu0 %193, %v189
  %v195 = vpop.permute.xlu0 %194
  %v197 = vmul.f32 %v195, %v16
  %v198 = vadd.f32 %v191, %v197
  %199 = vset.pattern.permute.xlu0 7
  %200 = vperm.xlu0 %199, %v189
  %v201 = vpop.permute.xlu0 %200
  %v203 = vmul.f32 %v201, %v22
  %v204 = vadd.f32 %v198, %v203
  %205 = vset.pattern.permute.xlu0 8
  %206 = vperm.xlu0 %205, %v189
  %v207 = vpop.permute.xlu0 %206
  %v209 = vmul.f32 %v207, %v28
  %v210 = vadd.f32 %v204, %v209
  %v211 = vxor.u32 %v210, 2147483648
  %v212 = vmul.f32 %v211, 1.442695
  %v213 = vpow.pop %v212
  %v214 = vadd.f32 %v213, 1.0
  %v215 = vrcp.pop %v214
  %v216 = vmul.f32 1.0, %v215
  %v217 = vtanh.pop %v210
  %v218 = vmul.f32 %v216, %v183
  %220 = vrot.lane.b32.xlu0 %v217, 119
  %v221 = vpop.permute.xlu0 %220
  %v223 = vmul.f32 %v216, %v221
  %225 = vrot.lane.b32.xlu0 %v223, 3
  %v226 = vpop.permute.xlu0 %225
  %v228 = vadd.f32 %v218, %v226
  %v229 = vtanh.pop %v228
  %231 = vrot.lane.b32.xlu0 %v229, 3
  %v232 = vpop.permute.xlu0 %231
  %v234 = vmul.f32 %v216, %v232
  %s235 = scalar_lea.vmem %s0, 10
  %v236 = vld [vmem:[%s235] sm:$0x3]
  %238 = vset.pattern.permute.xlu0 6
  %239 = vperm.xlu0 %238, %v234
  %v240 = vpop.permute.xlu0 %239
  %v242 = vmul.f32 %v240, %v16
  %v243 = vadd.f32 %v236, %v242
  %244 = vset.pattern.permute.xlu0 7
  %245 = vperm.xlu0 %244, %v234
  %v246 = vpop.permute.xlu0 %245
  %v248 = vmul.f32 %v246, %v22
  %v249 = vadd.f32 %v243, %v248
  %250 = vset.pattern.permute.xlu0 8
  %251 = vperm.xlu0 %250, %v234
  %v252 = vpop.permute.xlu0 %251
  %v254 = vmul.f32 %v252, %v28
  %v255 = vadd.f32 %v249, %v254
  %v256 = vxor.u32 %v255, 2147483648
  %v257 = vmul.f32 %v256, 1.442695
  %v258 = vpow.pop %v257
  %v259 = vadd.f32 %v258, 1.0
  %v260 = vrcp.pop %v259
  %v261 = vmul.f32 1.0, %v260
  %v262 = vtanh.pop %v255
  %v263 = vmul.f32 %v261, %v228
  %265 = vrot.lane.b32.xlu0 %v262, 119
  %v266 = vpop.permute.xlu0 %265
  %v268 = vmul.f32 %v261, %v266
  %270 = vrot.lane.b32.xlu0 %v268, 3
  %v271 = vpop.permute.xlu0 %270
  %v273 = vadd.f32 %v263, %v271
  %v274 = vtanh.pop %v273
  %276 = vrot.lane.b32.xlu0 %v274, 3
  %v277 = vpop.permute.xlu0 %276
  %v279 = vmul.f32 %v261, %v277
  %s280 = scalar_lea.vmem %s0, 12
  %v281 = vld [vmem:[%s280] sm:$0x3]
  %283 = vset.pattern.permute.xlu0 6
  %284 = vperm.xlu0 %283, %v279
  %v285 = vpop.permute.xlu0 %284
  %v287 = vmul.f32 %v285, %v16
  %v288 = vadd.f32 %v281, %v287
  %289 = vset.pattern.permute.xlu0 7
  %290 = vperm.xlu0 %289, %v279
  %v291 = vpop.permute.xlu0 %290
  %v293 = vmul.f32 %v291, %v22
  %v294 = vadd.f32 %v288, %v293
  %295 = vset.pattern.permute.xlu0 8
  %296 = vperm.xlu0 %295, %v279
  %v297 = vpop.permute.xlu0 %296
  %v299 = vmul.f32 %v297, %v28
  %v300 = vadd.f32 %v294, %v299
  %v301 = vxor.u32 %v300, 2147483648
  %v302 = vmul.f32 %v301, 1.442695
  %v303 = vpow.pop %v302
  %v304 = vadd.f32 %v303, 1.0
  %v305 = vrcp.pop %v304
  %v306 = vmul.f32 1.0, %v305
  %v307 = vtanh.pop %v300
  %v308 = vmul.f32 %v306, %v273
  %310 = vrot.lane.b32.xlu0 %v307, 119
  %v311 = vpop.permute.xlu0 %310
  %v313 = vmul.f32 %v306, %v311
  %315 = vrot.lane.b32.xlu0 %v313, 3
  %v316 = vpop.permute.xlu0 %315
  %v318 = vadd.f32 %v308, %v316
  %v319 = vtanh.pop %v318
  %321 = vrot.lane.b32.xlu0 %v319, 3
  %v322 = vpop.permute.xlu0 %321
  %v324 = vmul.f32 %v306, %v322
  %s325 = scalar_lea.vmem %s0, 14
  %v326 = vld [vmem:[%s325] sm:$0x3]
  %328 = vset.pattern.permute.xlu0 6
  %329 = vperm.xlu0 %328, %v324
  %v330 = vpop.permute.xlu0 %329
  %v332 = vmul.f32 %v330, %v16
  %v333 = vadd.f32 %v326, %v332
  %334 = vset.pattern.permute.xlu0 7
  %335 = vperm.xlu0 %334, %v324
  %v336 = vpop.permute.xlu0 %335
  %v338 = vmul.f32 %v336, %v22
  %v339 = vadd.f32 %v333, %v338
  %340 = vset.pattern.permute.xlu0 8
  %341 = vperm.xlu0 %340, %v324
  %v342 = vpop.permute.xlu0 %341
  %v344 = vmul.f32 %v342, %v28
  %v345 = vadd.f32 %v339, %v344
  %v346 = vxor.u32 %v345, 2147483648
  %v347 = vmul.f32 %v346, 1.442695
  %v348 = vpow.pop %v347
  %v349 = vadd.f32 %v348, 1.0
  %v350 = vrcp.pop %v349
  %v351 = vmul.f32 1.0, %v350
  %v352 = vtanh.pop %v345
  %v353 = vmul.f32 %v351, %v318
  %355 = vrot.lane.b32.xlu0 %v352, 119
  %v356 = vpop.permute.xlu0 %355
  %v358 = vmul.f32 %v351, %v356
  %360 = vrot.lane.b32.xlu0 %v358, 3
  %v361 = vpop.permute.xlu0 %360
  %v363 = vadd.f32 %v353, %v361
  %v364 = vtanh.pop %v363
  %366 = vrot.lane.b32.xlu0 %v364, 3
  %v367 = vpop.permute.xlu0 %366
  %v369 = vmul.f32 %v351, %v367
  %v371 = vunpack.c.l.s4 1966171168
  %v372 = vunpack.c.0.s8 %v371
  %v373 = vlaneseq
  %v374 = vshrl.u32 %v373, 7
  %v375 = vsub.s32 %v372, %v374
  %v376 = vrot.slane %v54, %v375
  %v377 = vcombine.high %v376, %v376
  %v379 = vunpack.c.l.s4 1966171168
  %v380 = vunpack.c.0.s8 %v379
  %v381 = vlaneseq
  %v382 = vshrl.u32 %v381, 7
  %v383 = vsub.s32 %v380, %v382
  %v384 = vrot.slane %v376, %v383
  %v386 = vunpack.c.l.s4 1966171168
  %v387 = vunpack.c.0.s8 %v386
  %v388 = vlaneseq
  %v389 = vshrl.u32 %v388, 7
  %v390 = vsub.s32 %v387, %v389
  %v391 = vrot.slane %v377, %v390
  %v395 = vunpack.c.l.s4 1966171168
  %v396 = vunpack.c.0.s8 %v395
  %v397 = vlaneseq
  %v398 = vshrl.u32 %v397, 7
  %v399 = vsub.s32 %v396, %v398
  %v400 = vrot.slane %v99, %v399
  %v401 = vcombine.high %v400, %v400
  %v403 = vunpack.c.l.s4 1966171168
  %v404 = vunpack.c.0.s8 %v403
  %v405 = vlaneseq
  %v406 = vshrl.u32 %v405, 7
  %v407 = vsub.s32 %v404, %v406
  %v408 = vrot.slane %v400, %v407
  %v410 = vunpack.c.l.s4 1966171168
  %v411 = vunpack.c.0.s8 %v410
  %v412 = vlaneseq
  %v413 = vshrl.u32 %v412, 7
  %v414 = vsub.s32 %v411, %v413
  %v415 = vrot.slane %v401, %v414
  %v417 = vunpack.c.l.s4 1966171168
  %v418 = vunpack.c.0.s8 %v417
  %v419 = vlaneseq
  %v420 = vshrl.u32 %v419, 7
  %v421 = vsub.s32 %v418, %v420
  %v422 = vrot.slane %v144, %v421
  %v423 = vcombine.high %v422, %v422
  %v425 = vunpack.c.l.s4 1966171168
  %v426 = vunpack.c.0.s8 %v425
  %v427 = vlaneseq
  %v428 = vshrl.u32 %v427, 7
  %v429 = vsub.s32 %v426, %v428
  %v430 = vrot.slane %v422, %v429
  %v432 = vunpack.c.l.s4 1966171168
  %v433 = vunpack.c.0.s8 %v432
  %v434 = vlaneseq
  %v435 = vshrl.u32 %v434, 7
  %v436 = vsub.s32 %v433, %v435
  %v437 = vrot.slane %v423, %v436
  %v439 = vunpack.c.l.s4 1966171168
  %v440 = vunpack.c.0.s8 %v439
  %v441 = vlaneseq
  %v442 = vshrl.u32 %v441, 7
  %v443 = vsub.s32 %v440, %v442
  %v444 = vrot.slane %v189, %v443
  %v445 = vcombine.high %v444, %v444
  %v447 = vunpack.c.l.s4 1966171168
  %v448 = vunpack.c.0.s8 %v447
  %v449 = vlaneseq
  %v450 = vshrl.u32 %v449, 7
  %v451 = vsub.s32 %v448, %v450
  %v452 = vrot.slane %v444, %v451
  %v454 = vunpack.c.l.s4 1966171168
  %v455 = vunpack.c.0.s8 %v454
  %v456 = vlaneseq
  %v457 = vshrl.u32 %v456, 7
  %v458 = vsub.s32 %v455, %v457
  %v459 = vrot.slane %v445, %v458
  %v461 = vunpack.c.l.s4 1966171168
  %v462 = vunpack.c.0.s8 %v461
  %v463 = vlaneseq
  %v464 = vshrl.u32 %v463, 7
  %v465 = vsub.s32 %v462, %v464
  %v466 = vrot.slane %v234, %v465
  %v467 = vcombine.high %v466, %v466
  %v469 = vunpack.c.l.s4 1966171168
  %v470 = vunpack.c.0.s8 %v469
  %v471 = vlaneseq
  %v472 = vshrl.u32 %v471, 7
  %v473 = vsub.s32 %v470, %v472
  %v474 = vrot.slane %v466, %v473
  %v476 = vunpack.c.l.s4 1966171168
  %v477 = vunpack.c.0.s8 %v476
  %v478 = vlaneseq
  %v479 = vshrl.u32 %v478, 7
  %v480 = vsub.s32 %v477, %v479
  %v481 = vrot.slane %v467, %v480
  %v483 = vunpack.c.l.s4 1966171168
  %v484 = vunpack.c.0.s8 %v483
  %v485 = vlaneseq
  %v486 = vshrl.u32 %v485, 7
  %v487 = vsub.s32 %v484, %v486
  %v488 = vrot.slane %v279, %v487
  %v489 = vcombine.high %v488, %v488
  %v491 = vunpack.c.l.s4 1966171168
  %v492 = vunpack.c.0.s8 %v491
  %v493 = vlaneseq
  %v494 = vshrl.u32 %v493, 7
  %v495 = vsub.s32 %v492, %v494
  %v496 = vrot.slane %v488, %v495
  %v498 = vunpack.c.l.s4 1966171168
  %v499 = vunpack.c.0.s8 %v498
  %v500 = vlaneseq
  %v501 = vshrl.u32 %v500, 7
  %v502 = vsub.s32 %v499, %v501
  %v503 = vrot.slane %v489, %v502
  %v505 = vunpack.c.l.s4 1966171168
  %v506 = vunpack.c.0.s8 %v505
  %v507 = vlaneseq
  %v508 = vshrl.u32 %v507, 7
  %v509 = vsub.s32 %v506, %v508
  %v510 = vrot.slane %v324, %v509
  %v511 = vcombine.high %v510, %v510
  %v513 = vunpack.c.l.s4 1966171168
  %v514 = vunpack.c.0.s8 %v513
  %v515 = vlaneseq
  %v516 = vshrl.u32 %v515, 7
  %v517 = vsub.s32 %v514, %v516
  %v518 = vrot.slane %v510, %v517
  %v520 = vunpack.c.l.s4 1966171168
  %v521 = vunpack.c.0.s8 %v520
  %v522 = vlaneseq
  %v523 = vshrl.u32 %v522, 7
  %v524 = vsub.s32 %v521, %v523
  %v525 = vrot.slane %v511, %v524
  %v528 = vunpack.c.l.s4 1966171168
  %v529 = vunpack.c.0.s8 %v528
  %v530 = vlaneseq
  %v531 = vshrl.u32 %v530, 7
  %v532 = vsub.s32 %v529, %v531
  %v533 = vrot.slane %v369, %v532
  %v534 = vcombine.high %v533, %v533
  %v536 = vunpack.c.l.s4 1966171168
  %v537 = vunpack.c.0.s8 %v536
  %v538 = vlaneseq
  %v539 = vshrl.u32 %v538, 7
  %v540 = vsub.s32 %v537, %v539
  %v541 = vrot.slane %v533, %v540
  %v543 = vunpack.c.l.s4 1966171168
  %v544 = vunpack.c.0.s8 %v543
  %v545 = vlaneseq
  %v546 = vshrl.u32 %v545, 7
  %v547 = vsub.s32 %v544, %v546
  %v548 = vrot.slane %v534, %v547
  %v549 = vlaneseq
  %v550 = vshrl.u32 %v549, 7
  %v551 = vsub.s32 0, %v550
  %v552 = vrot.slane %v408, %v551
  %v553 = vlaneseq
  %v554 = vshrl.u32 %v553, 7
  %v555 = vsub.s32 0, %v554
  %v556 = vrot.slane %v415, %v555
  %v559 = vlaneseq
  %v560 = vshrl.u32 %v559, 7
  %v561 = vsub.s32 0, %v560
  %v562 = vrot.slane %v430, %v561
  %v563 = vlaneseq
  %v564 = vshrl.u32 %v563, 7
  %v565 = vsub.s32 0, %v564
  %v566 = vrot.slane %v437, %v565
  %v569 = vlaneseq
  %v570 = vshrl.u32 %v569, 7
  %v571 = vsub.s32 0, %v570
  %v572 = vrot.slane %v452, %v571
  %v573 = vlaneseq
  %v574 = vshrl.u32 %v573, 7
  %v575 = vsub.s32 0, %v574
  %v576 = vrot.slane %v459, %v575
  %v579 = vlaneseq
  %v580 = vshrl.u32 %v579, 7
  %v581 = vsub.s32 0, %v580
  %v582 = vrot.slane %v474, %v581
  %v583 = vlaneseq
  %v584 = vshrl.u32 %v583, 7
  %v585 = vsub.s32 0, %v584
  %v586 = vrot.slane %v481, %v585
  %v589 = vlaneseq
  %v590 = vshrl.u32 %v589, 7
  %v591 = vsub.s32 0, %v590
  %v592 = vrot.slane %v496, %v591
  %v593 = vlaneseq
  %v594 = vshrl.u32 %v593, 7
  %v595 = vsub.s32 0, %v594
  %v596 = vrot.slane %v503, %v595
  %v599 = vlaneseq
  %v600 = vshrl.u32 %v599, 7
  %v601 = vsub.s32 0, %v600
  %v602 = vrot.slane %v518, %v601
  %v603 = vlaneseq
  %v604 = vshrl.u32 %v603, 7
  %v605 = vsub.s32 0, %v604
  %v606 = vrot.slane %v525, %v605
  %v609 = vlaneseq
  %v610 = vshrl.u32 %v609, 7
  %v611 = vsub.s32 0, %v610
  %v612 = vrot.slane %v541, %v611
  %v613 = vlaneseq
  %v614 = vshrl.u32 %v613, 7
  %v615 = vsub.s32 0, %v614
  %v616 = vrot.slane %v548, %v615
  %vm619 = vcmask 1040384
  %v620 = vsel %vm619, %v384, %v552
  %v621 = vsel %vm619, %v391, %v556
  %vm622 = vcmask 1041408
  %v623 = vsel %vm622, %v620, %v562
  %v624 = vsel %vm622, %v621, %v566
  %vm625 = vcmask 1042432
  %v626 = vsel %vm625, %v623, %v572
  %v627 = vsel %vm625, %v624, %v576
  %vm628 = vcmask 1043456
  %v629 = vsel %vm628, %v626, %v582
  %v630 = vsel %vm628, %v627, %v586
  %vm631 = vcmask 1044480
  %v632 = vsel %vm631, %v629, %v592
  %v633 = vsel %vm631, %v630, %v596
  %vm634 = vcmask 1045504
  %v635 = vsel %vm634, %v632, %v602
  %v636 = vsel %vm634, %v633, %v606
  %vm637 = vcmask 1046528
  %v638 = vsel %vm637, %v635, %v612
  %v639 = vsel %vm637, %v636, %v616
  %v640 = vxor.u32 %v638, 2147483648
  %v641 = vxor.u32 %v639, 2147483648
  %v642 = vmul.f32 %v640, 1.442695
  %v643 = vpow.pop %v642
  %v644 = vmul.f32 %v641, 1.442695
  %v645 = vpow.pop %v644
  %v646 = vadd.f32 %v643, 1.0
  %v647 = vadd.f32 %v645, 1.0
  %v648 = vrcp.pop %v646
  %v649 = vmul.f32 1.0, %v648
  %v650 = vrcp.pop %v647
  %v651 = vmul.f32 1.0, %v650
  %v652 = vmul.f32 %v638, 1.442695
  %v653 = vpow.pop %v652
  %v654 = vmul.f32 %v639, 1.442695
  %v655 = vpow.pop %v654
  %658 = vrot.lane.b32.xlu0 %v649, 122
  %v659 = vpop.permute.xlu0 %658
  %660 = vrot.lane.b32.xlu0 %v651, 122
  %v661 = vpop.permute.xlu0 %660
  %666 = vrot.lane.b32.xlu0 %v653, 122
  %v667 = vpop.permute.xlu0 %666
  %668 = vrot.lane.b32.xlu0 %v655, 122
  %v669 = vpop.permute.xlu0 %668
  %vm672 = vcmask 7168
  %v673 = vsel %vm672, %v659, %v667
  %v674 = vsel %vm672, %v661, %v669
  %vm675 = vcmask 23552
  %676 = vst.msk [vmem:[%s2] sm:$0xff] %vm675, %v673
  %677 = vst.msk [vmem:[%s2 + $0x8] sm:$0xff] %vm675, %v674
  // Predicated region
  $region10: #{lstm_bgmm_forward.1} parent=0 // pred_check
    _
  $region11: #{lstm_bgmm_forward.1} parent=0 // pred_check_branch
    %679 = sbr.rel (0) target = $region13
  $region12: #{lstm_bgmm_forward.1} parent=0 // pred_region
    _
  $region13: #{lstm_bgmm_forward.1} parent=0 // pred_fallthru
    _
  // Predicated region
  $region14: #{lstm_bgmm_forward.1} parent=0 // pred_check
    _
  $region15: #{lstm_bgmm_forward.1} parent=0 // pred_check_branch
    %681 = sbr.rel (0) target = $region17
  $region16: #{lstm_bgmm_forward.1} parent=0 // pred_region
    _
  $region17: #{lstm_bgmm_forward.1} parent=0 // pred_fallthru
    _

</llo_original>
